<compile_context>
chip_gen: v7x
topology: tpu7x:2x2x1
jax: 0.10.0
libtpu: 0.0.40
codegen_flags: <defaults>
</compile_context>

<pallas_src>
import jax
import jax.numpy as jnp
from jax.experimental import pallas as pl
from jax.experimental.pallas import tpu as pltpu


def _gather_kernel(idx_ref, row_ref, out_ref):
    # idx_ref: (N_pad,) int32 in SMEM (scalar prefetch); consumed by the
    #          index_maps, unused in the body.
    # row_ref: (1, 1, d_pad) — embedding row for the current token, DMA'd by
    #          the BlockSpec pipeline directly from the HBM-resident table.
    # out_ref: (T, d_pad)   — output block for the current group of T tokens,
    #          resident in VMEM across the inner grid axis.
    del idx_ref
    t = pl.program_id(1)
    out_ref[pl.ds(t, 1), :] = row_ref[0]


def one_hot_embeddings(x, table, *, tokens_per_block=8):
    """Embedding lookup (forward of PyTorch nn.Embedding): returns table[x].

    x:     integer indices, shape (B, S)
    table: (vocab, d_model) float32 embedding weight
    out:   (B, S, d_model) float32
    """
    assert tokens_per_block % 8 == 0, "tokens_per_block must be a multiple of 8"
    B, S = x.shape
    vocab, d_model = table.shape
    N = B * S
    T = tokens_per_block

    # Lane-dense output: pad d_model up to a multiple of 128 so stores and
    # writebacks are unmasked vst's.  (No-op when d_model is already aligned.)
    d_pad = ((d_model + 127) // 128) * 128
    table_p = table if d_pad == d_model else jnp.pad(
        table, ((0, 0), (0, d_pad - d_model)))
    # Reshape so the gathered single-row block's last two dims equal the full
    # array dims (keeps Mosaic's (8, 128) block-shape rule satisfied).
    table_p = table_p.reshape(vocab, 1, d_pad)

    # Indices: flatten, clamp (DMA gather has no bounds check), pad to a
    # multiple of T (padded slots harmlessly gather row 0 and are sliced off).
    idx = jnp.clip(x.reshape(N).astype(jnp.int32), 0, vocab - 1)
    n_pad = ((N + T - 1) // T) * T
    if n_pad != N:
        idx = jnp.pad(idx, (0, n_pad - N))
    num_blocks = n_pad // T

    grid_spec = pltpu.PrefetchScalarGridSpec(
        num_scalar_prefetch=1,
        grid=(num_blocks, T),
        in_specs=[
            # One embedding row per inner step; the row is selected by the
            # scalar-prefetched token id (data-dependent block index; block
            # size 1 along vocab, so block index == row index).
            pl.BlockSpec((1, 1, d_pad),
                         lambda i, t, idx_ref: (idx_ref[i * T + t], 0, 0)),
        ],
        # Output block stays resident across the inner per-token axis; one
        # lane-dense (T, d_pad) slab is written back per outer step.
        out_specs=pl.BlockSpec((T, d_pad), lambda i, t, idx_ref: (i, 0)),
    )

    out_flat = pl.pallas_call(
        _gather_kernel,
        out_shape=jax.ShapeDtypeStruct((n_pad, d_pad), table.dtype),
        grid_spec=grid_spec,
        compiler_params=pltpu.CompilerParams(
            # Token-block axis is independent -> shard across TensorCores.
            # Inner per-token axis carries the resident output block.
            dimension_semantics=("parallel", "arbitrary"),
        ),
        # NOTE: for very small per-row DMAs a deeper pipeline
        # (pipeline_mode=pl.Buffered(3) on the table spec) can hide more
        # latency; default depth is sufficient for these shapes.
    )(idx, table_p)

    return out_flat[:N, :d_model].reshape(B, S, d_model)


if __name__ == "__main__":
    # Module config: d_model=32, vocab=32; input tokens (B=2, S=8).
    d_model = 32
    vocab = 32
    B, S = 2, 8

    key = jax.random.PRNGKey(0)
    k_tab, k_idx = jax.random.split(key)

    # Deterministic synthetic embedding table (stand-in for nn.Embedding weight).
    table = jax.random.normal(k_tab, (vocab, d_model), dtype=jnp.float32)
    x = jax.random.randint(k_idx, (B, S), 0, vocab, dtype=jnp.int32)

    out = one_hot_embeddings(x, table)
    out = jax.block_until_ready(out)

    # Reference check: plain gather (exact — kernel is a pure row copy).
    ref = table[x]
    assert out.shape == (B, S, d_model)
    assert jnp.allclose(out, ref), "mismatch vs reference embedding lookup"

    print("KERNEL_OK")
</pallas_src>

<mosaic_0001>
module attributes {stable_mosaic.version = 11 : i64} {
  func.func @_gather_kernel(%arg0: i32, %arg1: i32, %arg2: memref<16xi32, #tpu.memory_space<smem>>, %arg3: memref<1x1x128xf32, #tpu.memory_space<vmem>>, %arg4: memref<8x128xf32, #tpu.memory_space<vmem>>) attributes {dimension_semantics = [#tpu.dimension_semantics<parallel>, #tpu.dimension_semantics<arbitrary>], iteration_bounds = array<i64: 2, 8>, scalar_prefetch = 1 : i64, scratch_operands = 0 : i64, tpu.core_type = #tpu.core_type<tc>, window_params = [{transform_indices = @transform_0, window_bounds = array<i64: 1, 1, 128>}, {transform_indices = @transform_1, window_bounds = array<i64: 8, 128>}]} {
    %c0 = arith.constant 0 : index
    %c0_0 = arith.constant 0 : index
    %c0_1 = arith.constant 0 : index
    %0 = vector.load %arg3[%c0, %c0_0, %c0_1] : memref<1x1x128xf32, #tpu.memory_space<vmem>>, vector<1x1x128xf32>
    %1 = vector.shape_cast %0 : vector<1x1x128xf32> to vector<1x128xf32>
    %2 = arith.index_cast %arg1 : i32 to index
    %c0_2 = arith.constant 0 : index
    %3 = vector.load %arg4[%2, %c0_2] : memref<8x128xf32, #tpu.memory_space<vmem>>, vector<1x128xf32>
    tpu.vector_store %arg4[%2, %c0_2], %1 {strides = array<i32>} : memref<8x128xf32, #tpu.memory_space<vmem>>, vector<1x128xf32>,
    return
  }
  func.func @transform_0(%arg0: i32, %arg1: i32, %arg2: memref<16xi32, #tpu.memory_space<smem>>) -> (i32, i32, i32) {
    %c8_i32 = arith.constant 8 : i32
    %0 = arith.muli %arg0, %c8_i32 : i32
    %1 = arith.addi %0, %arg1 : i32
    %2 = arith.index_cast %1 : i32 to index
    %3 = memref.load %arg2[%2] : memref<16xi32, #tpu.memory_space<smem>>
    %c0_i32 = arith.constant 0 : i32
    %c0_i32_0 = arith.constant 0 : i32
    %c0_i32_1 = arith.constant 0 : i32
    return %3, %c0_i32, %c0_i32_0 : i32, i32, i32
  }
  func.func @transform_1(%arg0: i32, %arg1: i32, %arg2: memref<16xi32, #tpu.memory_space<smem>>) -> (i32, i32) {
    %c0_i32 = arith.constant 0 : i32
    %c0_i32_0 = arith.constant 0 : i32
    return %arg0, %c0_i32 : i32, i32
  }
}

</mosaic_0001>

<llo_original>
// kernel: tpu_custom_call.1
$region0: #{tpu_custom_call.1}
  #allocation0 [shape = 'u32[]', space=smem, size = 0x4, offset = 0x4, fixed_abs, tag = 'smem constant byte address 0x4 - core index']
  #allocation1 [shape = 'u32[144,128]{1,0:T(1,128)}', space=vmem, size = 0x12000, scoped, tag = 'internal scratch']
  #allocation2 [shape = 's32[1]{0}', space=sflag, size = 0x4, scoped, tag = 'scoped memory for tpu_custom_call.1']
  #allocation3 [shape = 'u8[512]{0}', space=smem, size = 0x200, scoped, tag = 'prefetched SMEM operand 0']
  %s0 = inlined_call_operand.hbm [shape: s32[16], index: 0, kind: input, shape index: {}]
  %s1 = inlined_call_operand.hbm [shape: f32[32,1,128], index: 1, kind: input, shape index: {}]
  %s2 = inlined_call_operand.hbm [shape: f32[16,128], index: 2, kind: output, shape index: {}]
  %s3 = sld [smem:[#allocation0]]
  $region41: #{tpu_custom_call.1} parent=0
    _
  %s5 = ssub.s32 1, %s3
  %s6 = scalar_select 0, %s5, %s3
  %8 = dma.hbm_to_smem %s0, 16, [#allocation3], [#allocation2]
  %9 = dma.done [#allocation2], 16
  %10 = sfence
  $region1: #{tpu_custom_call.1} parent=0
    #allocation4 [shape = 'u8[1024]{0}', space=vmem, size = 0x400, scoped, tag = 'input window, operand 1']
    #allocation5 [shape = 's32[2]{0}', space=sflag, size = 0x8, scoped, tag = 'scoped memory for tpu_custom_call.1']
    #allocation6 [shape = 's32[2]{0}', space=sflag, size = 0x8, scoped, tag = 'scoped memory for tpu_custom_call.1']
    #allocation7 [shape = 'u8[8192]{0}', space=vmem, size = 0x2000, scoped, tag = 'output window, operand 0']
    %11 = vsyncpa [#allocation5], 0
    %s12 = scalar_lea.sflag [#allocation5], 1
    %13 = vsyncpa %s12, 0
    %14 = vsyncpa [#allocation6], 0
    %s15 = scalar_lea.sflag [#allocation6], 1
    %16 = vsyncpa %s15, 0
    loop: start=0, step=1, limit=18
    $region2: #{tpu_custom_call.1} parent=1 // loop_pre_header
      _
    $region3: #{tpu_custom_call.1} parent=1 // loop_header
      %s18 = sphi 0, %s22
      %p19 = scmp.ge.s32.totalorder %s18, 18
      %s25 = sphi 0, %s37
      %s26 = sphi 0, %s33
      %s27 = sphi 0, %s25
      %s28 = sphi 0, %s26
      %s29 = sphi 0, %s27
      %s30 = sphi 0, %s28
      %s46 = sphi 0, %s48
      %s49 = sphi 0, %s46
      %s50 = sphi 0, %s49
      %s66 = sphi 0, %s50
      %s72 = sphi 0, %s74
      %s75 = sphi 0, %s72
      %s76 = sphi 0, %s75
      %s92 = sphi 0, %s76
    $region4: #{tpu_custom_call.1} parent=1 // loop_header_branch
      %21 = sbr.rel (%p19) target = $region8
    $region5: #{tpu_custom_call.1} parent=1 // loop_body
      %s23 = ssub.s32 %s18, 1
      %s24 = ssub.s32 %s18, 2
      %s31 = sadd.s32 1, %s26
      %p32 = scmp.ge.s32.totalorder %s31, 8
      %s33 = scalar_select %p32, 0, %s31
      %s34 = sadd.s32 1, %s25
      %s35 = scalar_select %p32, %s34, %s25
      %p36 = scmp.ge.s32.totalorder %s35, 2
      %s37 = scalar_select %p36, 0, %s35
      %s38 = smul.u32 %s25, 8
      %s39 = sadd.s32 %s38, %s26
      %s40 = sld [smem:[#allocation3 + %s39]]
      %s41 = smul.u32 %s37, 8
      %s42 = sadd.s32 %s41, %s33
      %s43 = sld [smem:[#allocation3 + %s42]]
      %s44 = ssub.s32 %s40, %s43
      %p45 = scmp.eq.s32.totalorder %s44, 0
      %s47 = sadd.s32 %s46, 1
      %s48 = scalar_select %p45, %s46, %s47
      %p51 = pneg %p45
      %p52 = scmp.eq.s32.totalorder %s18, 15
      %p53 = por %p51, %p52
      %p54 = scmp.ne.s32.totalorder %s46, %s49
      %p55 = scmp.eq.s32.totalorder %s18, 0
      %p56 = por %p54, %p55
      %p57 = scmp.ne.s32.totalorder %s46, %s49
      %p58 = scmp.eq.s32.totalorder %s23, 15
      %p59 = por %p57, %p58
      %p60 = scmp.ne.s32.totalorder %s49, %s50
      %p61 = scmp.eq.s32.totalorder %s23, 0
      %p62 = por %p60, %p61
      %p63 = scmp.ne.s32.totalorder %s49, %s50
      %p64 = scmp.eq.s32.totalorder %s24, 15
      %p65 = por %p63, %p64
      %p67 = scmp.ne.s32.totalorder %s50, %s66
      %p68 = scmp.eq.s32.totalorder %s24, 0
      %p69 = por %p67, %p68
      %s70 = ssub.s32 %s25, %s37
      %p71 = scmp.eq.s32.totalorder %s70, 0
      %s73 = sadd.s32 %s72, 1
      %s74 = scalar_select %p71, %s72, %s73
      %p77 = pneg %p71
      %p78 = scmp.eq.s32.totalorder %s18, 15
      %p79 = por %p77, %p78
      %p80 = scmp.ne.s32.totalorder %s72, %s75
      %p81 = scmp.eq.s32.totalorder %s18, 0
      %p82 = por %p80, %p81
      %p83 = scmp.ne.s32.totalorder %s72, %s75
      %p84 = scmp.eq.s32.totalorder %s23, 15
      %p85 = por %p83, %p84
      %p86 = scmp.ne.s32.totalorder %s75, %s76
      %p87 = scmp.eq.s32.totalorder %s23, 0
      %p88 = por %p86, %p87
      %p89 = scmp.ne.s32.totalorder %s75, %s76
      %p90 = scmp.eq.s32.totalorder %s24, 15
      %p91 = por %p89, %p90
      %p93 = scmp.ne.s32.totalorder %s76, %s92
      %p94 = scmp.eq.s32.totalorder %s24, 0
      %p95 = por %p93, %p94
      %p96 = scmp.le.s32.totalorder 1, %s18
      %p97 = scmp.lt.s32.totalorder %s18, 17
      %p98 = pnand %p96, %p97
      %p99 = pneg %p98
      // Predicated region
      $region9: #{tpu_custom_call.1} parent=5 // pred_check
        _
      $region10: #{tpu_custom_call.1} parent=5 // pred_check_branch
        %101 = sbr.rel (%p98) target = $region12
      $region11: #{tpu_custom_call.1} parent=5 // pred_region
        %s102 = ssub.s32 %s18, 1
      $region12: #{tpu_custom_call.1} parent=5 // pred_fallthru
        _
      %p103 = scmp.lt.s32.totalorder %s18, 16
      // Predicated region
      $region13: #{tpu_custom_call.1} parent=5 // pred_check
        %p104 = pneg %p103
      $region14: #{tpu_custom_call.1} parent=5 // pred_check_branch
        %106 = sbr.rel (%p104) target = $region16
      $region15: #{tpu_custom_call.1} parent=5 // pred_region
        // Predicated region
        $region17: #{tpu_custom_call.1} parent=15 // pred_check
          %p107 = pneg %p56
        $region18: #{tpu_custom_call.1} parent=15 // pred_check_branch
          %109 = sbr.rel (%p107) target = $region20
        $region19: #{tpu_custom_call.1} parent=15 // pred_region
          %s110 = sand.u32 %s46, 1
          %s111 = scalar_lea.sflag [#allocation5], %s110
          %s112 = sand.u32 %s46, 1
          %s113 = scalar_lea.vmem [#allocation4], %s112
          %s114 = smul.u32 %s25, 8
          %s115 = sadd.s32 %s114, %s26
          %s116 = sld [smem:[#allocation3 + %s115]]
          %s118 = ssub.s32 16, 16
          %119 = vsyncadd %s111, %s118
          %s120 = smul.addr %s116, 16
          %s121 = scalar_lea.hbm %s1, %s120
          %s123 = sshll.u32 %s113, 4
          %s124 = int_to_ptr.vmem [resolvable:$true] %s123
          %126 = dma.hbm_to_vmem [thread:$0]  %s121, 16, %s124, %s111
        $region20: #{tpu_custom_call.1} parent=15 // pred_fallthru
          _
      $region16: #{tpu_custom_call.1} parent=5 // pred_fallthru
        _
      %p127 = scmp.le.s32.totalorder 1, %s18
      %p128 = scmp.lt.s32.totalorder %s18, 17
      %p129 = pnand %p127, %p128
      %p130 = pneg %p129
      // Predicated region
      $region21: #{tpu_custom_call.1} parent=5 // pred_check
        _
      $region22: #{tpu_custom_call.1} parent=5 // pred_check_branch
        %132 = sbr.rel (%p129) target = $region24
      $region23: #{tpu_custom_call.1} parent=5 // pred_region
        %s133 = ssub.s32 %s18, 1
        %s134 = sand.u32 %s49, 1
        %s135 = scalar_lea.sflag [#allocation5], %s134
        %s136 = sand.u32 %s49, 1
        %s137 = scalar_lea.vmem [#allocation4], %s136
        // Predicated region
        $region25: #{tpu_custom_call.1} parent=23 // pred_check
          %p138 = pneg %p62
        $region26: #{tpu_custom_call.1} parent=23 // pred_check_branch
          %140 = sbr.rel (%p138) target = $region28
        $region27: #{tpu_custom_call.1} parent=23 // pred_region
          %141 = dma.done %s135, 16
        $region28: #{tpu_custom_call.1} parent=23 // pred_fallthru
          _
        %s142 = sand.u32 %s49, 1
        %s143 = scalar_lea.sflag [#allocation5], %s142
        %s144 = sand.u32 %s49, 1
        %s145 = scalar_lea.vmem [#allocation4], %s144
        %p146 = pneg %p62
        %p147 = pneg %p59
        %p148 = pneg %p88
        %p149 = pneg %p85
        %s150 = sand.u32 %s75, 1
        %s151 = scalar_lea.sflag [#allocation6], %s150
        %s152 = sand.u32 %s75, 1
        %s153 = smul.addr %s152, 8
        %s154 = scalar_lea.vmem [#allocation7], %s153
        %s155 = smul.u32 %s27, 8
        %s156 = sadd.s32 %s155, %s28
        %s157 = sld [smem:[#allocation3 + %s156]]
        %v158 = vld [vmem:[%s137] sm:$0x1]
        %s159 = scalar_lea.vmem %s154, %s28 [#allocation7]
        %160 = vst [vmem:[%s159] sm:$0x1] %v158
        %s161 = sand.u32 %s75, 1
        %s162 = scalar_lea.sflag [#allocation6], %s161
        %s163 = sand.u32 %s75, 1
        %s164 = smul.addr %s163, 8
        %s165 = scalar_lea.vmem [#allocation7], %s164
        // Predicated region
        $region29: #{tpu_custom_call.1} parent=23 // pred_check
          %p166 = pneg %p85
        $region30: #{tpu_custom_call.1} parent=23 // pred_check_branch
          %168 = sbr.rel (%p166) target = $region32
        $region31: #{tpu_custom_call.1} parent=23 // pred_region
          %s170 = ssub.s32 128, 128
          %171 = vsyncadd %s162, %s170
          %s172 = smul.addr %s27, 128
          %s173 = scalar_lea.hbm %s2, %s172
          %s175 = sshll.u32 %s165, 4
          %s176 = int_to_ptr.vmem [resolvable:$true] %s175
          %178 = dma.vmem_to_hbm [thread:$0]  %s176, 128, %s173, %s162
        $region32: #{tpu_custom_call.1} parent=23 // pred_fallthru
          _
      $region24: #{tpu_custom_call.1} parent=5 // pred_fallthru
        _
      %p179 = scmp.le.s32.totalorder 2, %s18
      // Predicated region
      $region33: #{tpu_custom_call.1} parent=5 // pred_check
        %p180 = pneg %p179
      $region34: #{tpu_custom_call.1} parent=5 // pred_check_branch
        %182 = sbr.rel (%p180) target = $region36
      $region35: #{tpu_custom_call.1} parent=5 // pred_region
        %s183 = ssub.s32 %s18, 2
        // Predicated region
        $region37: #{tpu_custom_call.1} parent=35 // pred_check
          %p184 = pneg %p91
        $region38: #{tpu_custom_call.1} parent=35 // pred_check_branch
          %186 = sbr.rel (%p184) target = $region40
        $region39: #{tpu_custom_call.1} parent=35 // pred_region
          %s187 = sand.u32 %s76, 1
          %s188 = scalar_lea.sflag [#allocation6], %s187
          %s189 = sand.u32 %s76, 1
          %s190 = smul.addr %s189, 8
          %s191 = scalar_lea.vmem [#allocation7], %s190
          %192 = dma.done %s188, 128
        $region40: #{tpu_custom_call.1} parent=35 // pred_fallthru
          _
      $region36: #{tpu_custom_call.1} parent=5 // pred_fallthru
        _
    $region6: #{tpu_custom_call.1} parent=1 // loop_footer
      %s22 = sadd.s32 1, %s18
    $region7: #{tpu_custom_call.1} parent=1 // loop_footer_branch
      %17 = sbr.rel target = $region3
    $region8: #{tpu_custom_call.1} parent=1 // loop_exit
      _
    %193 = vsyncpa [#allocation5], 1
    %s194 = scalar_lea.sflag [#allocation5], 1
    %195 = vsyncpa %s194, 1
    %196 = vsyncpa [#allocation6], 1
    %s197 = scalar_lea.sflag [#allocation6], 1
    %198 = vsyncpa %s197, 1

</llo_original>
